<compile_context>
chip_gen: v5e
topology: v5e:2x2
jax: 0.10.0
libtpu: 0.0.40
codegen_flags: <defaults>
</compile_context>

<pallas_src>
import jax
import jax.numpy as jnp
from jax.experimental import pallas as pl
from jax.experimental.pallas import tpu as pltpu

BAN_TARGET = 3  # forward() hardcodes `target == 3`


def _ban_loss_kernel(out_ref, tgt_ref, partial_ref, m_sc, l_sc, xt_sc):
    """Grid = (batch tiles [parallel], class chunks [arbitrary]).

    out_ref : (TB, TC) logits chunk, native dtype
    tgt_ref : (TB, 1)  int32 labels
    partial_ref : (1, 8, 128) f32 broadcast partial sum for this batch tile
    m_sc / l_sc / xt_sc : (TB, 1) f32 online-logsumexp / gathered-logit carries
    """
    j = pl.program_id(1)
    tc = out_ref.shape[-1]

    @pl.when(j == 0)
    def _init():
        m_sc[...] = jnp.full_like(m_sc, -jnp.inf)
        l_sc[...] = jnp.zeros_like(l_sc)
        xt_sc[...] = jnp.zeros_like(xt_sc)

    x = out_ref[...]                                    # (TB, TC) native dtype
    t = tgt_ref[...]                                    # (TB, 1)  int32

    # Online logsumexp update. Row max on the native dtype is exact; only the
    # (TB,1) carries and the fused cast-sub-exp path are f32 (no f32 tile copy).
    m_chunk = jnp.max(x, axis=-1, keepdims=True).astype(jnp.float32)       # (TB,1)
    m_prev = m_sc[...]
    m_new = jnp.maximum(m_prev, m_chunk)
    ex = jnp.exp(x.astype(jnp.float32) - m_new)                            # (TB,TC)
    l_sc[...] = l_sc[...] * jnp.exp(m_prev - m_new) + jnp.sum(
        ex, axis=-1, keepdims=True)
    m_sc[...] = m_new

    # Gather x[i, t[i]] when the label falls in this class chunk: one-hot compare
    # against a (1, TC) iota (broadcast by the compare); at most one hit per row
    # so the native-dtype select/sum is exact. The ban mask is NOT applied here
    # (one fewer (TB,TC) pass) — it is applied to the (TB,1) result at the end.
    # NOTE: labels outside [0, C) that are not the ban class silently give
    # x_t = 0 (PyTorch's CE would raise on such inputs).
    col = jax.lax.broadcasted_iota(jnp.int32, (1, tc), 1) + j * tc
    xt_sc[...] += jnp.sum(jnp.where(col == t, x, 0), axis=-1,
                          keepdims=True).astype(jnp.float32)

    @pl.when(j == pl.num_programs(1) - 1)
    def _finalize():
        valid = (t != BAN_TARGET).astype(jnp.float32)                      # (TB,1)
        ce = (m_sc[...] + jnp.log(l_sc[...]) - xt_sc[...]) * valid
        # Lane-dense unmasked store of this tile's partial sum; wrapper reads [:,0,0].
        partial_ref[...] = jnp.broadcast_to(jnp.sum(ce), partial_ref.shape)


def _f32_tile_budget_bytes():
    """Per-tile f32 working-set budget: smaller on v7x (64 MiB VMEM per TC)."""
    try:
        vmem = getattr(pltpu.get_tpu_info(), "vmem_capacity_bytes", None)
    except Exception:
        vmem = None
    if vmem is not None and vmem >= 96 * 1024 * 1024:
        return 8 * 1024 * 1024      # v5e / v6e (128 MiB VMEM): larger tiles
    return 4 * 1024 * 1024          # v7x (64 MiB VMEM) or unknown: conservative


def _pick_blocks(batch, n_classes, budget_bytes):
    """Pick (block_b, block_c).

    block_c: full C when small, else 2048-lane chunks (multiple of 128).
    block_b: multiple of 8, capped so (a) the f32 working set fits the budget,
    (b) the lane-padded (TB,1) target buffers stay <= 2 MiB (4096-row cap), and
    (c) there are >= 2 batch tiles when B >= 16 (dual-TC sharding on v7x).
    """
    block_c = n_classes if n_classes <= 2048 else 2048

    max_elems = budget_bytes // 4
    cap_rows = max(8, (max_elems // block_c) // 8 * 8)
    cap_rows = min(cap_rows, 4096)
    if batch >= 16:
        cap_rows = min(cap_rows, pl.cdiv(pl.cdiv(batch, 2), 8) * 8)
    need_rows = pl.cdiv(batch, 8) * 8
    return int(min(cap_rows, need_rows)), int(block_c)


@jax.jit
def ban_loss(output, target):
    """output: (B, C) logits (any float dtype); target: (B,) int labels -> scalar."""
    B, C = output.shape
    budget = _f32_tile_budget_bytes()
    block_b, block_c = _pick_blocks(B, C, budget)
    grid_b = int(pl.cdiv(B, block_b))
    grid_c = int(pl.cdiv(C, block_c))
    b_pad = grid_b * block_b
    c_pad = grid_c * block_c

    logits = output                          # native dtype: no wrapper-side upcast
    tgt = target.astype(jnp.int32).reshape(B, 1)
    if c_pad != C:
        # Class padding must not perturb max / logsumexp -> pad with dtype-min
        # (exp underflows to 0; real logits always dominate the max).
        logits = jnp.pad(logits, ((0, 0), (0, c_pad - C)),
                         constant_values=jnp.finfo(logits.dtype).min)
    if b_pad != B:
        # Padding rows get the banned label so they contribute exactly 0.
        logits = jnp.pad(logits, ((0, b_pad - B), (0, 0)))
        tgt = jnp.pad(tgt, ((0, b_pad - B), (0, 0)), constant_values=BAN_TARGET)

    vmem_limit = (64 * 1024 * 1024 if budget >= 8 * 1024 * 1024
                  else 40 * 1024 * 1024)     # tighter limit on v7x / unknown

    partials = pl.pallas_call(
        _ban_loss_kernel,
        out_shape=jax.ShapeDtypeStruct((grid_b, 8, 128), jnp.float32),
        grid=(grid_b, grid_c),
        in_specs=[
            pl.BlockSpec((block_b, block_c), lambda i, j: (i, j)),
            pl.BlockSpec((block_b, 1), lambda i, j: (i, 0)),
        ],
        out_specs=pl.BlockSpec((1, 8, 128), lambda i, j: (i, 0, 0)),
        scratch_shapes=[pltpu.VMEM((block_b, 1), jnp.float32)] * 3,
        compiler_params=pltpu.CompilerParams(
            dimension_semantics=("parallel", "arbitrary"),
            vmem_limit_bytes=vmem_limit,
        ),
    )(logits, tgt)

    return jnp.sum(partials[:, 0, 0]) / jnp.float32(B)


def ban_loss_ref(output, target):
    """Pure-JAX reference mirroring the PyTorch module."""
    log_sm = jax.nn.log_softmax(output.astype(jnp.float32), axis=1)
    ce = -jnp.take_along_axis(log_sm, target.reshape(-1, 1), axis=1)[:, 0]
    ce = jnp.where(target == BAN_TARGET, 0.0, ce)
    return jnp.mean(ce)


if __name__ == "__main__":
    key = jax.random.PRNGKey(0)
    k1, k2, k3, k4, k5, k6 = jax.random.split(key, 6)

    # Test 1: f32 logits, batch NOT a multiple of 8 (exercises batch padding).
    B1, C1 = 13, 32
    logits1 = jax.random.normal(k1, (B1, C1), dtype=jnp.float32)
    target1 = jax.random.randint(k2, (B1,), 0, C1, dtype=jnp.int32)
    target1 = target1.at[0].set(BAN_TARGET)          # ensure the ban path is hit
    got1 = jax.block_until_ready(ban_loss(logits1, target1))
    ref1 = jax.block_until_ready(ban_loss_ref(logits1, target1))
    assert jnp.allclose(got1, ref1, atol=1e-5, rtol=1e-5), (got1, ref1)

    # Test 2: native bf16 logits; B=16 -> two batch tiles (dual-TC path).
    B2, C2 = 16, 128
    logits2 = jax.random.normal(k3, (B2, C2), dtype=jnp.bfloat16)
    target2 = jax.random.randint(k4, (B2,), 0, C2, dtype=jnp.int32)
    target2 = target2.at[-1].set(BAN_TARGET)
    got2 = jax.block_until_ready(ban_loss(logits2, target2))
    ref2 = jax.block_until_ready(ban_loss_ref(logits2, target2))
    assert jnp.allclose(got2, ref2, atol=1e-4, rtol=1e-4), (got2, ref2)

    # Test 3: C > 2048 -> multi-chunk online logsumexp + class padding +
    # batch padding + two batch tiles.
    B3, C3 = 24, 2304
    logits3 = jax.random.normal(k5, (B3, C3), dtype=jnp.float32)
    target3 = jax.random.randint(k6, (B3,), 0, C3, dtype=jnp.int32)
    target3 = target3.at[1].set(BAN_TARGET)
    got3 = jax.block_until_ready(ban_loss(logits3, target3))
    ref3 = jax.block_until_ready(ban_loss_ref(logits3, target3))
    assert jnp.allclose(got3, ref3, atol=1e-5, rtol=1e-5), (got3, ref3)

    print("KERNEL_OK")
</pallas_src>

<mosaic_0001>
module attributes {stable_mosaic.version = 11 : i64} {
  func.func @_ban_loss_kernel(%arg0: i32, %arg1: i32, %arg2: memref<16x32xf32, #tpu.memory_space<vmem>>, %arg3: memref<16x1xi32, #tpu.memory_space<vmem>>, %arg4: memref<1x8x128xf32, #tpu.memory_space<vmem>>, %arg5: memref<16x1xf32, #tpu.memory_space<vmem>>, %arg6: memref<16x1xf32, #tpu.memory_space<vmem>>, %arg7: memref<16x1xf32, #tpu.memory_space<vmem>>) attributes {dimension_semantics = [#tpu.dimension_semantics<parallel>, #tpu.dimension_semantics<arbitrary>], iteration_bounds = array<i64: 1, 1>, scalar_prefetch = 0 : i64, scratch_operands = 3 : i64, tpu.core_type = #tpu.core_type<tc>, window_params = [{transform_indices = @transform_0, window_bounds = array<i64: 16, 32>}, {transform_indices = @transform_1, window_bounds = array<i64: 16, 1>}, {transform_indices = @transform_2, window_bounds = array<i64: 1, 8, 128>}]} {
    %c0_i32 = arith.constant 0 : i32
    %0 = arith.cmpi eq, %arg1, %c0_i32 : i32
    %1 = arith.extui %0 : i1 to i32
    %c0_i32_0 = arith.constant 0 : i32
    %2 = arith.cmpi ne, %1, %c0_i32_0 : i32
    scf.if %2 {
      %cst_21 = arith.constant 0xFF800000 : f32
      %39 = vector.broadcast %cst_21 : f32 to vector<16x1xf32>
      %c0_22 = arith.constant 0 : index
      %c0_23 = arith.constant 0 : index
      %40 = vector.load %arg5[%c0_22, %c0_23] : memref<16x1xf32, #tpu.memory_space<vmem>>, vector<16x1xf32>
      tpu.vector_store %arg5[%c0_22, %c0_23], %39 {strides = array<i32>} : memref<16x1xf32, #tpu.memory_space<vmem>>, vector<16x1xf32>,
      %cst_24 = arith.constant 0.000000e+00 : f32
      %41 = vector.broadcast %cst_24 : f32 to vector<16x1xf32>
      %c0_25 = arith.constant 0 : index
      %c0_26 = arith.constant 0 : index
      %42 = vector.load %arg6[%c0_25, %c0_26] : memref<16x1xf32, #tpu.memory_space<vmem>>, vector<16x1xf32>
      tpu.vector_store %arg6[%c0_25, %c0_26], %41 {strides = array<i32>} : memref<16x1xf32, #tpu.memory_space<vmem>>, vector<16x1xf32>,
      %cst_27 = arith.constant 0.000000e+00 : f32
      %43 = vector.broadcast %cst_27 : f32 to vector<16x1xf32>
      %c0_28 = arith.constant 0 : index
      %c0_29 = arith.constant 0 : index
      %44 = vector.load %arg7[%c0_28, %c0_29] : memref<16x1xf32, #tpu.memory_space<vmem>>, vector<16x1xf32>
      tpu.vector_store %arg7[%c0_28, %c0_29], %43 {strides = array<i32>} : memref<16x1xf32, #tpu.memory_space<vmem>>, vector<16x1xf32>,
    } else {
    }
    %c0 = arith.constant 0 : index
    %c0_1 = arith.constant 0 : index
    %3 = vector.load %arg2[%c0, %c0_1] : memref<16x32xf32, #tpu.memory_space<vmem>>, vector<16x32xf32>
    %c0_2 = arith.constant 0 : index
    %c0_3 = arith.constant 0 : index
    %4 = vector.load %arg3[%c0_2, %c0_3] : memref<16x1xi32, #tpu.memory_space<vmem>>, vector<16x1xi32>
    %cst = arith.constant dense<0xFF800000> : vector<16xf32>
    %5 = vector.multi_reduction <maximumf>, %3, %cst [1] : vector<16x32xf32> to vector<16xf32>
    %6 = vector.shape_cast %5 : vector<16xf32> to vector<16x1xf32>
    %c0_4 = arith.constant 0 : index
    %c0_5 = arith.constant 0 : index
    %7 = vector.load %arg5[%c0_4, %c0_5] : memref<16x1xf32, #tpu.memory_space<vmem>>, vector<16x1xf32>
    %8 = arith.maximumf %7, %6 : vector<16x1xf32>
    %9 = vector.broadcast %8 : vector<16x1xf32> to vector<16x32xf32>
    %10 = arith.subf %3, %9 : vector<16x32xf32>
    %11 = math.exp %10 : vector<16x32xf32>
    %c0_6 = arith.constant 0 : index
    %c0_7 = arith.constant 0 : index
    %12 = vector.load %arg6[%c0_6, %c0_7] : memref<16x1xf32, #tpu.memory_space<vmem>>, vector<16x1xf32>
    %13 = arith.subf %7, %8 : vector<16x1xf32>
    %14 = math.exp %13 : vector<16x1xf32>
    %15 = arith.mulf %12, %14 : vector<16x1xf32>
    %cst_8 = arith.constant dense<0.000000e+00> : vector<16xf32>
    %16 = vector.multi_reduction <add>, %11, %cst_8 [1] : vector<16x32xf32> to vector<16xf32>
    %17 = vector.shape_cast %16 : vector<16xf32> to vector<16x1xf32>
    %18 = arith.addf %15, %17 : vector<16x1xf32>
    %c0_9 = arith.constant 0 : index
    %c0_10 = arith.constant 0 : index
    %19 = vector.load %arg6[%c0_9, %c0_10] : memref<16x1xf32, #tpu.memory_space<vmem>>, vector<16x1xf32>
    tpu.vector_store %arg6[%c0_9, %c0_10], %18 {strides = array<i32>} : memref<16x1xf32, #tpu.memory_space<vmem>>, vector<16x1xf32>,
    %c0_11 = arith.constant 0 : index
    %c0_12 = arith.constant 0 : index
    %20 = vector.load %arg5[%c0_11, %c0_12] : memref<16x1xf32, #tpu.memory_space<vmem>>, vector<16x1xf32>
    tpu.vector_store %arg5[%c0_11, %c0_12], %8 {strides = array<i32>} : memref<16x1xf32, #tpu.memory_space<vmem>>, vector<16x1xf32>,
    %21 = tpu.iota {dimensions = array<i32: 1>} : vector<1x32xi32>
    %c32_i32 = arith.constant 32 : i32
    %22 = arith.muli %arg1, %c32_i32 : i32
    %23 = vector.broadcast %22 : i32 to vector<1x32xi32>
    %24 = arith.addi %21, %23 : vector<1x32xi32>
    %c0_13 = arith.constant 0 : index
    %c0_14 = arith.constant 0 : index
    %25 = vector.load %arg7[%c0_13, %c0_14] : memref<16x1xf32, #tpu.memory_space<vmem>>, vector<16x1xf32>
    %26 = vector.broadcast %24 : vector<1x32xi32> to vector<16x32xi32>
    %27 = vector.broadcast %4 : vector<16x1xi32> to vector<16x32xi32>
    %28 = arith.cmpi eq, %26, %27 : vector<16x32xi32>
    %c0_i32_15 = arith.constant 0 : i32
    %29 = arith.sitofp %c0_i32_15 : i32 to f32
    %30 = vector.broadcast %29 : f32 to vector<16x32xf32>
    %31 = arith.select %28, %3, %30 : vector<16x32xi1>, vector<16x32xf32>
    %cst_16 = arith.constant dense<0.000000e+00> : vector<16xf32>
    %32 = vector.multi_reduction <add>, %31, %cst_16 [1] : vector<16x32xf32> to vector<16xf32>
    %33 = vector.shape_cast %32 : vector<16xf32> to vector<16x1xf32>
    %34 = arith.addf %25, %33 : vector<16x1xf32>
    %c0_17 = arith.constant 0 : index
    %c0_18 = arith.constant 0 : index
    %35 = vector.load %arg7[%c0_17, %c0_18] : memref<16x1xf32, #tpu.memory_space<vmem>>, vector<16x1xf32>
    tpu.vector_store %arg7[%c0_17, %c0_18], %34 {strides = array<i32>} : memref<16x1xf32, #tpu.memory_space<vmem>>, vector<16x1xf32>,
    %c0_i32_19 = arith.constant 0 : i32
    %36 = arith.cmpi eq, %arg1, %c0_i32_19 : i32
    %37 = arith.extui %36 : i1 to i32
    %c0_i32_20 = arith.constant 0 : i32
    %38 = arith.cmpi ne, %37, %c0_i32_20 : i32
    scf.if %38 {
      %c3_i32 = arith.constant 3 : i32
      %39 = vector.broadcast %c3_i32 : i32 to vector<16x1xi32>
      %40 = arith.cmpi ne, %4, %39 : vector<16x1xi32>
      %41 = arith.extui %40 : vector<16x1xi1> to vector<16x1xi32>
      %42 = arith.sitofp %41 : vector<16x1xi32> to vector<16x1xf32>
      %c0_21 = arith.constant 0 : index
      %c0_22 = arith.constant 0 : index
      %43 = vector.load %arg5[%c0_21, %c0_22] : memref<16x1xf32, #tpu.memory_space<vmem>>, vector<16x1xf32>
      %c0_23 = arith.constant 0 : index
      %c0_24 = arith.constant 0 : index
      %44 = vector.load %arg6[%c0_23, %c0_24] : memref<16x1xf32, #tpu.memory_space<vmem>>, vector<16x1xf32>
      %45 = math.log %44 : vector<16x1xf32>
      %46 = arith.addf %43, %45 : vector<16x1xf32>
      %c0_25 = arith.constant 0 : index
      %c0_26 = arith.constant 0 : index
      %47 = vector.load %arg7[%c0_25, %c0_26] : memref<16x1xf32, #tpu.memory_space<vmem>>, vector<16x1xf32>
      %48 = arith.subf %46, %47 : vector<16x1xf32>
      %49 = arith.mulf %48, %42 : vector<16x1xf32>
      %50 = vector.shape_cast %49 : vector<16x1xf32> to vector<1x16x1xf32>
      %cst_27 = arith.constant dense<0.000000e+00> : vector<1xf32>
      %51 = vector.multi_reduction <add>, %50, %cst_27 [1, 2] : vector<1x16x1xf32> to vector<1xf32>
      %52 = vector.shape_cast %51 : vector<1xf32> to vector<1x1x1xf32>
      %53 = vector.extract %52[0, 0, 0] : f32 from vector<1x1x1xf32>
      %54 = vector.broadcast %53 : f32 to vector<1x8x128xf32>
      %c0_28 = arith.constant 0 : index
      %c0_29 = arith.constant 0 : index
      %c0_30 = arith.constant 0 : index
      %55 = vector.load %arg4[%c0_28, %c0_29, %c0_30] : memref<1x8x128xf32, #tpu.memory_space<vmem>>, vector<1x8x128xf32>
      tpu.vector_store %arg4[%c0_28, %c0_29, %c0_30], %54 {strides = array<i32>} : memref<1x8x128xf32, #tpu.memory_space<vmem>>, vector<1x8x128xf32>,
    } else {
    }
    return
  }
  func.func @transform_0(%arg0: i32, %arg1: i32) -> (i32, i32) {
    %c0_i32 = arith.constant 0 : i32
    return %arg0, %arg1 : i32, i32
  }
  func.func @transform_1(%arg0: i32, %arg1: i32) -> (i32, i32) {
    %c0_i32 = arith.constant 0 : i32
    %c0_i32_0 = arith.constant 0 : i32
    return %arg0, %c0_i32 : i32, i32
  }
  func.func @transform_2(%arg0: i32, %arg1: i32) -> (i32, i32, i32) {
    %c0_i32 = arith.constant 0 : i32
    %c0_i32_0 = arith.constant 0 : i32
    %c0_i32_1 = arith.constant 0 : i32
    return %arg0, %c0_i32, %c0_i32_0 : i32, i32, i32
  }
}

</mosaic_0001>

<llo_original>
// kernel: ban_loss.1
$region0: #{ban_loss.1}
  #allocation0 [shape = 'u32[]', space=smem, size = 0x4, offset = 0x4, fixed_abs, tag = 'smem constant byte address 0x4 - core index']
  #allocation1 [shape = 'u32[72,128]{1,0:T(1,128)}', space=vmem, size = 0x9000, scoped, tag = 'internal scratch']
  #allocation2 [shape = 'f32[16,1]{1,0:T(8,128)}', space=vmem, size = 0x2000, scoped, tag = 'scratch operand']
  #allocation3 [shape = 'f32[16,1]{1,0:T(8,128)}', space=vmem, size = 0x2000, scoped, tag = 'scratch operand']
  #allocation4 [shape = 'f32[16,1]{1,0:T(8,128)}', space=vmem, size = 0x2000, scoped, tag = 'scratch operand']
  %s0 = inlined_call_operand.vmem [shape: f32[16,32], index: 0, kind: input, shape index: {}]
  %s1 = inlined_call_operand.vmem [shape: s32[16,1], index: 1, kind: input, shape index: {}]
  %s2 = inlined_call_operand.vmem [shape: f32[1,8,128], index: 2, kind: output, shape index: {}]
  %s3 = sld [smem:[#allocation0]]
  $region26: #{ban_loss.1} parent=0
    _
  %s5 = ssub.s32 1, %s3
  %s6 = scalar_select 0, %s5, %s3
  // Predicated region
  $region2: #{ban_loss.1} parent=0 // pred_check
    _
  $region3: #{ban_loss.1} parent=0 // pred_check_branch
    %8 = sbr.rel (0) target = $region5
  $region4: #{ban_loss.1} parent=0 // pred_region
    _
  $region5: #{ban_loss.1} parent=0 // pred_fallthru
    _
  // Predicated region
  $region6: #{ban_loss.1} parent=0 // pred_check
    _
  $region7: #{ban_loss.1} parent=0 // pred_check_branch
    %10 = sbr.rel (0) target = $region9
  $region8: #{ban_loss.1} parent=0 // pred_region
    _
  $region9: #{ban_loss.1} parent=0 // pred_fallthru
    _
  %p11 = scmp.eq.s32.totalorder 0, 0
  // Predicated region
  $region10: #{ban_loss.1} parent=0 // pred_check
    %p12 = pneg %p11
  $region11: #{ban_loss.1} parent=0 // pred_check_branch
    %14 = sbr.rel (%p12) target = $region13
  $region12: #{ban_loss.1} parent=0 // pred_region
    %vm15 = vcmask 7168
    %16 = vst.msk [vmem:[#allocation2] sm:$0xff] %vm15, -inf
    %17 = vst.msk [vmem:[#allocation2 + $0x8] sm:$0xff] %vm15, -inf
    %18 = vst.msk [vmem:[#allocation3] sm:$0xff] %vm15, 0.0
    %19 = vst.msk [vmem:[#allocation3 + $0x8] sm:$0xff] %vm15, 0.0
    %20 = vst.msk [vmem:[#allocation4] sm:$0xff] %vm15, 0.0
    %21 = vst.msk [vmem:[#allocation4 + $0x8] sm:$0xff] %vm15, 0.0
  $region13: #{ban_loss.1} parent=0 // pred_fallthru
    _
  %v22 = vld [vmem:[%s0] sm:$0xff]
  %v23 = vld [vmem:[%s0 + $0x8] sm:$0xff]
  %v24 = vld [vmem:[%s1] sm:$0xff]
  %v25 = vld [vmem:[%s1 + $0x8] sm:$0xff]
  %vm26 = vcmask 261120
  %v27 = vsel %vm26, %v22, -inf
  %28 = vmax.xlane.f32.xlu0 %v27
  %v29 = vpop.xlane.xlu0 %28
  %v30 = vsel %vm26, %v23, -inf
  %31 = vmax.xlane.f32.xlu0 %v30
  %v32 = vpop.xlane.xlu0 %31
  %v33 = vld [vmem:[#allocation2] sm:$0xff]
  %v34 = vld [vmem:[#allocation2 + $0x8] sm:$0xff]
  %v35 = vmax.f32 %v33, %v29
  %v36 = vmax.f32 %v34, %v32
  %38 = vset.pattern.permute.xlu0 0
  %39 = vperm.xlu0 %38, %v35
  %v40 = vpop.permute.xlu0 %39
  %43 = vset.pattern.permute.xlu0 0
  %44 = vperm.xlu0 %43, %v36
  %v45 = vpop.permute.xlu0 %44
  %v47 = vsub.f32 %v22, %v40
  %v48 = vsub.f32 %v23, %v45
  %v49 = vmul.f32 %v47, 1.442695
  %v50 = vpow.pop %v49
  %v51 = vmul.f32 %v48, 1.442695
  %v52 = vpow.pop %v51
  %v53 = vld [vmem:[#allocation3] sm:$0xff]
  %v54 = vld [vmem:[#allocation3 + $0x8] sm:$0xff]
  %v55 = vsub.f32 %v33, %v35
  %v56 = vsub.f32 %v34, %v36
  %v57 = vmul.f32 %v55, 1.442695
  %v58 = vpow.pop %v57
  %v59 = vmul.f32 %v56, 1.442695
  %v60 = vpow.pop %v59
  %v61 = vmul.f32 %v53, %v58
  %v62 = vmul.f32 %v54, %v60
  %v63 = vsel %vm26, %v50, 0.0
  %64 = vadd.xlane.f32.xlu0 %v63
  %v65 = vpop.xlane.xlu0 %64
  %v66 = vsel %vm26, %v52, 0.0
  %67 = vadd.xlane.f32.xlu0 %v66
  %v68 = vpop.xlane.xlu0 %67
  %v69 = vadd.f32 %v61, %v65
  %v70 = vadd.f32 %v62, %v68
  %vm71 = vcmask 7168
  %72 = vst.msk [vmem:[#allocation3] sm:$0xff] %vm71, %v69
  %73 = vst.msk [vmem:[#allocation3 + $0x8] sm:$0xff] %vm71, %v70
  %74 = vst.msk [vmem:[#allocation2] sm:$0xff] %vm71, %v35
  %75 = vst.msk [vmem:[#allocation2 + $0x8] sm:$0xff] %vm71, %v36
  %v76 = vlaneseq
  %v77 = vand.u32 %v76, 127
  %s78 = smul.u32 0, 32
  %v79 = vstv %s78
  %v80 = vadd.s32 %v77, %v79
  %v81 = vld [vmem:[#allocation4] sm:$0xff]
  %v82 = vld [vmem:[#allocation4 + $0x8] sm:$0xff]
  %83 = vset.pattern.permute.xlu0 0
  %84 = vperm.xlu0 %83, %v24
  %v85 = vpop.permute.xlu0 %84
  %86 = vset.pattern.permute.xlu0 0
  %87 = vperm.xlu0 %86, %v25
  %v88 = vpop.permute.xlu0 %87
  %vm89 = vcmp.eq.s32.totalorder %v80, %v85
  %vm90 = vcmp.eq.s32.totalorder %v80, %v88
  %v91 = vsel %vm89, %v22, 0.0
  %v92 = vsel %vm90, %v23, 0.0
  %v93 = vsel %vm26, %v91, 0.0
  %94 = vadd.xlane.f32.xlu0 %v93
  %v95 = vpop.xlane.xlu0 %94
  %v96 = vsel %vm26, %v92, 0.0
  %97 = vadd.xlane.f32.xlu0 %v96
  %v98 = vpop.xlane.xlu0 %97
  %v99 = vadd.f32 %v81, %v95
  %v100 = vadd.f32 %v82, %v98
  %101 = vst.msk [vmem:[#allocation4] sm:$0xff] %vm71, %v99
  %102 = vst.msk [vmem:[#allocation4 + $0x8] sm:$0xff] %vm71, %v100
  // Predicated region
  $region14: #{ban_loss.1} parent=0 // pred_check
    %p103 = pneg %p11
  $region15: #{ban_loss.1} parent=0 // pred_check_branch
    %105 = sbr.rel (%p103) target = $region17
  $region16: #{ban_loss.1} parent=0 // pred_region
    %vm106 = vcmp.ne.s32.totalorder %v24, 3
    %vm107 = vcmp.ne.s32.totalorder %v25, 3
    %v108 = vsel %vm106, 1, 0
    %v109 = vsel %vm107, 1, 0
    %v110 = vcvt.s32.f32 %v108
    %v111 = vcvt.s32.f32 %v109
    %v112 = vld [vmem:[#allocation2] sm:$0xff]
    %v113 = vld [vmem:[#allocation2 + $0x8] sm:$0xff]
    %v114 = vld [vmem:[#allocation3] sm:$0xff]
    %v115 = vld [vmem:[#allocation3 + $0x8] sm:$0xff]
    %v116 = vlog2.pop %v114
    %v117 = vmul.f32 %v116, 0.6931472
    %v118 = vlog2.pop %v115
    %v119 = vmul.f32 %v118, 0.6931472
    %v120 = vadd.f32 %v112, %v117
    %v121 = vadd.f32 %v113, %v119
    %v122 = vld [vmem:[#allocation4] sm:$0xff]
    %v123 = vld [vmem:[#allocation4 + $0x8] sm:$0xff]
    %v124 = vsub.f32 %v120, %v122
    %v125 = vsub.f32 %v121, %v123
    %v126 = vmul.f32 %v124, %v110
    %v127 = vmul.f32 %v125, %v111
    %v128 = vsel %vm71, %v126, 0.0
    %v129 = vsel %vm71, %v127, 0.0
    %v130 = vadd.f32 %v128, %v129
    %131 = vadd.xlane.f32.xlu0 %v130
    %v132 = vpop.xlane.xlu0 %131
    %v133 = vrot.slane %v132, 4
    %v134 = vadd.f32 %v132, %v133
    %v135 = vrot.slane %v134, 2
    %v136 = vadd.f32 %v134, %v135
    %v137 = vrot.slane %v136, 1
    %v138 = vadd.f32 %v136, %v137
    %s139 = vtos %v138
    %v140 = vstv %s139
    %141 = vst [vmem:[%s2] sm:$0xff] %v140
  $region17: #{ban_loss.1} parent=0 // pred_fallthru
    _
  // Predicated region
  $region18: #{ban_loss.1} parent=0 // pred_check
    _
  $region19: #{ban_loss.1} parent=0 // pred_check_branch
    %143 = sbr.rel (0) target = $region21
  $region20: #{ban_loss.1} parent=0 // pred_region
    _
  $region21: #{ban_loss.1} parent=0 // pred_fallthru
    _
  // Predicated region
  $region22: #{ban_loss.1} parent=0 // pred_check
    _
  $region23: #{ban_loss.1} parent=0 // pred_check_branch
    %145 = sbr.rel (0) target = $region25
  $region24: #{ban_loss.1} parent=0 // pred_region
    _
  $region25: #{ban_loss.1} parent=0 // pred_fallthru
    _

</llo_original>
